<compile_context>
chip_gen: v7x
topology: tpu7x:2x2x1
jax: 0.10.0
libtpu: 0.0.40
codegen_flags: <defaults>
</compile_context>

<pallas_src>
import functools
import math

import jax
import jax.numpy as jnp
from jax.experimental import pallas as pl
from jax.experimental.pallas import tpu as pltpu

_TARGET_BLOCK_BYTES = 2 * 1024 * 1024   # per in/out buffer (double-buffered -> ~8 MiB live)
_VMEM_LIMIT_BYTES = 32 * 1024 * 1024    # explicit, fits v5e/v6e/v7x with headroom


def _sublane_multiple(dtype) -> int:
    # 8 for f32, 16 for bf16, 32 for int8/fp8 (packed-sublane friendly tiles).
    return max(8, 32 // jnp.dtype(dtype).itemsize)


def _softmax_kernel(x_ref, o_ref, *, axis):
    # Mirrors the PyTorch module exactly: exp -> sum(keepdim) -> divide.
    # (No max-subtraction, same as the reference forward.)
    x = x_ref[...].astype(jnp.float32)
    e = jnp.exp(x)                                   # EUP
    s = jnp.sum(e, axis=axis, keepdims=True)         # lane/sublane reduce (XLU)
    o_ref[...] = (e / s).astype(o_ref.dtype)


def _softmax_last_axis(x2):
    """Softmax along the last axis of a 2-D array (rows, R)."""
    rows, r = x2.shape
    itemsize = jnp.dtype(x2.dtype).itemsize
    sub = _sublane_multiple(x2.dtype)

    # Rows per block, targeting ~_TARGET_BLOCK_BYTES per buffer.
    rows_blk = max(sub, (_TARGET_BLOCK_BYTES // (r * itemsize)) // sub * sub)
    if rows_blk >= rows:
        rows_blk = rows  # full leading dim is always a legal block dim
    # TODO(synk): a single row larger than the VMEM budget would need a
    # multi-pass (accumulate-then-normalize) kernel; not needed at these shapes.

    grid = (pl.cdiv(rows, rows_blk),)
    return pl.pallas_call(
        functools.partial(_softmax_kernel, axis=-1),
        out_shape=jax.ShapeDtypeStruct((rows, r), x2.dtype),
        grid_spec=pl.GridSpec(
            grid=grid,
            in_specs=[pl.BlockSpec((rows_blk, r), lambda i: (i, 0))],
            out_specs=pl.BlockSpec((rows_blk, r), lambda i: (i, 0)),
        ),
        compiler_params=pltpu.CompilerParams(
            dimension_semantics=("parallel",),
            vmem_limit_bytes=_VMEM_LIMIT_BYTES,
        ),
    )(x2)


def _softmax_middle_axis(x3):
    """Softmax along axis 1 of a 3-D array (outer, R, inner): no transposes,
    the lane axis stays the (dense) trailing `inner` dim."""
    outer, r, inner = x3.shape
    itemsize = jnp.dtype(x3.dtype).itemsize

    # Lane-axis tile: full `inner` if it fits the budget, else a 128-multiple.
    max_inner = _TARGET_BLOCK_BYTES // (r * itemsize)
    if max_inner >= inner:
        inner_blk = inner
    else:
        inner_blk = max(128, (max_inner // 128) * 128)
        if inner_blk > inner:
            inner_blk = inner

    block_bytes = r * inner_blk * itemsize
    outer_blk = max(1, min(outer, _TARGET_BLOCK_BYTES // max(block_bytes, 1)))

    grid = (pl.cdiv(outer, outer_blk), pl.cdiv(inner, inner_blk))
    return pl.pallas_call(
        functools.partial(_softmax_kernel, axis=1),
        out_shape=jax.ShapeDtypeStruct((outer, r, inner), x3.dtype),
        grid_spec=pl.GridSpec(
            grid=grid,
            in_specs=[pl.BlockSpec((outer_blk, r, inner_blk),
                                   lambda i, j: (i, 0, j))],
            out_specs=pl.BlockSpec((outer_blk, r, inner_blk),
                                   lambda i, j: (i, 0, j)),
        ),
        compiler_params=pltpu.CompilerParams(
            dimension_semantics=("parallel", "parallel"),
            vmem_limit_bytes=_VMEM_LIMIT_BYTES,
        ),
    )(x3)


def softmax(x, dim=None):
    """Pallas TPU equivalent of the reference Softmax.forward(x)."""
    orig_shape = x.shape

    if dim is None:
        # Module default: normalize by the sum over ALL elements.
        x2 = x.reshape(1, x.size)
        return _softmax_last_axis(x2).reshape(orig_shape)

    d = dim % x.ndim
    if d == x.ndim - 1:
        rows = math.prod(orig_shape[:-1])
        x2 = x.reshape(rows, orig_shape[-1])
        return _softmax_last_axis(x2).reshape(orig_shape)

    outer = math.prod(orig_shape[:d])
    r = orig_shape[d]
    inner = math.prod(orig_shape[d + 1:])
    x3 = x.reshape(outer, r, inner)
    return _softmax_middle_axis(x3).reshape(orig_shape)


if __name__ == "__main__":
    key = jax.random.PRNGKey(0)
    # NCHW, same small shape as the module's expected conv-style input.
    x = jax.random.normal(key, (2, 4, 16, 16), dtype=jnp.float32)

    def ref_softmax(x, dim):
        e = jnp.exp(x)
        if dim is None:
            s = jnp.sum(e)
        else:
            s = jnp.sum(e, axis=dim, keepdims=True)
        return e / s

    # Channel softmax (nn.Softmax(dim=1) on NCHW).
    y1 = softmax(x, dim=1)
    jax.block_until_ready(y1)
    assert y1.shape == x.shape and y1.dtype == x.dtype
    assert jnp.allclose(y1, ref_softmax(x, 1), rtol=1e-5, atol=1e-6)

    # Last-dim softmax.
    y2 = softmax(x, dim=-1)
    jax.block_until_ready(y2)
    assert jnp.allclose(y2, ref_softmax(x, -1), rtol=1e-5, atol=1e-6)

    # Module default dim=None (global normalization over all elements).
    y3 = softmax(x, dim=None)
    jax.block_until_ready(y3)
    assert jnp.allclose(y3, ref_softmax(x, None), rtol=1e-5, atol=1e-6)

    print("KERNEL_OK")
</pallas_src>

<mosaic_0001>
module attributes {stable_mosaic.version = 11 : i64} {
  func.func @_softmax_kernel(%arg0: i32, %arg1: i32, %arg2: memref<2x4x256xf32, #tpu.memory_space<vmem>>, %arg3: memref<2x4x256xf32, #tpu.memory_space<vmem>>) attributes {dimension_semantics = [#tpu.dimension_semantics<parallel>, #tpu.dimension_semantics<parallel>], iteration_bounds = array<i64: 1, 1>, scalar_prefetch = 0 : i64, scratch_operands = 0 : i64, tpu.core_type = #tpu.core_type<tc>, window_params = [{transform_indices = @transform_0, window_bounds = array<i64: 2, 4, 256>}, {transform_indices = @transform_1, window_bounds = array<i64: 2, 4, 256>}]} {
    %c0 = arith.constant 0 : index
    %c0_0 = arith.constant 0 : index
    %c0_1 = arith.constant 0 : index
    %0 = vector.load %arg2[%c0, %c0_0, %c0_1] : memref<2x4x256xf32, #tpu.memory_space<vmem>>, vector<2x4x256xf32>
    %1 = math.exp %0 : vector<2x4x256xf32>
    %cst = arith.constant dense<0.000000e+00> : vector<2x256xf32>
    %2 = vector.multi_reduction <add>, %1, %cst [1] : vector<2x4x256xf32> to vector<2x256xf32>
    %3 = vector.shape_cast %2 : vector<2x256xf32> to vector<2x1x256xf32>
    %4 = vector.broadcast %3 : vector<2x1x256xf32> to vector<2x4x256xf32>
    %5 = arith.divf %1, %4 : vector<2x4x256xf32>
    %c0_2 = arith.constant 0 : index
    %c0_3 = arith.constant 0 : index
    %c0_4 = arith.constant 0 : index
    %6 = vector.load %arg3[%c0_2, %c0_3, %c0_4] : memref<2x4x256xf32, #tpu.memory_space<vmem>>, vector<2x4x256xf32>
    tpu.vector_store %arg3[%c0_2, %c0_3, %c0_4], %5 {strides = array<i32>} : memref<2x4x256xf32, #tpu.memory_space<vmem>>, vector<2x4x256xf32>,
    return
  }
  func.func @transform_0(%arg0: i32, %arg1: i32) -> (i32, i32, i32) {
    %c0_i32 = arith.constant 0 : i32
    %c0_i32_0 = arith.constant 0 : i32
    return %arg0, %c0_i32, %arg1 : i32, i32, i32
  }
  func.func @transform_1(%arg0: i32, %arg1: i32) -> (i32, i32, i32) {
    %c0_i32 = arith.constant 0 : i32
    %c0_i32_0 = arith.constant 0 : i32
    return %arg0, %c0_i32, %arg1 : i32, i32, i32
  }
}

</mosaic_0001>

<llo_original>
// kernel: tpu_custom_call.1
$region0: #{tpu_custom_call.1}
  #allocation0 [shape = 'u32[]', space=smem, size = 0x4, offset = 0x4, fixed_abs, tag = 'smem constant byte address 0x4 - core index']
  #allocation1 [shape = 'u32[144,128]{1,0:T(1,128)}', space=vmem, size = 0x12000, scoped, tag = 'internal scratch']
  %s0 = inlined_call_operand.hbm [shape: f32[2,4,256], index: 0, kind: input, shape index: {}]
  %s1 = inlined_call_operand.hbm [shape: f32[2,4,256], index: 1, kind: output, shape index: {}]
  %s2 = sld [smem:[#allocation0]]
  $region18: #{tpu_custom_call.1} parent=0
    _
  %s4 = ssub.s32 1, %s2
  %s5 = scalar_select 0, %s4, %s2
  $region1: #{tpu_custom_call.1} parent=0
    #allocation2 [shape = 'u8[8192]{0}', space=vmem, size = 0x2000, scoped, tag = 'input window, operand 0, single buffered']
    #allocation3 [shape = 's32[1]{0}', space=sflag, size = 0x4, scoped, tag = 'scoped memory for tpu_custom_call.1']
    #allocation4 [shape = 's32[1]{0}', space=sflag, size = 0x4, scoped, tag = 'scoped memory for tpu_custom_call.1']
    #allocation5 [shape = 'u8[8192]{0}', space=vmem, size = 0x2000, scoped, tag = 'output window, operand 0, single buffered']
    %6 = vsyncpa [#allocation3], 0
    %7 = vsyncpa [#allocation4], 0
    // Predicated region
    $region2: #{tpu_custom_call.1} parent=1 // pred_check
      _
    $region3: #{tpu_custom_call.1} parent=1 // pred_check_branch
      %9 = sbr.rel (0) target = $region5
    $region4: #{tpu_custom_call.1} parent=1 // pred_region
      %s11 = ssub.s32 256, 256
      %12 = vsyncadd [#allocation3], %s11
      %s13 = sshll.u32 [#allocation2], 4
      %s14 = int_to_ptr.vmem [resolvable:$true] %s13
      %19 = dma.hbm_to_vmem [thread:$0]  %s0, 256, %s14, [#allocation3], 128, 128, 8
    $region5: #{tpu_custom_call.1} parent=1 // pred_fallthru
      _
    // Predicated region
    $region6: #{tpu_custom_call.1} parent=1 // pred_check
      _
    $region7: #{tpu_custom_call.1} parent=1 // pred_check_branch
      %21 = sbr.rel (0) target = $region9
    $region8: #{tpu_custom_call.1} parent=1 // pred_region
      %22 = dma.done [#allocation3], 256
    $region9: #{tpu_custom_call.1} parent=1 // pred_fallthru
      _
    %v23 = vld [vmem:[#allocation2] sm:$0xff]
    %v24 = vld [vmem:[#allocation2 + $0x8] sm:$0xff]
    %v25 = vmul.f32 %v23, 1.442695
    %v26 = vpow.pop %v25
    %v27 = vmul.f32 %v24, 1.442695
    %v28 = vpow.pop %v27
    %v31 = vcombine.high %v26, %v26
    %v32 = vcombine.high %v28, %v28
    %vm35 = vcmask 1043456
    %v36 = vsel %vm35, %v26, 0.0
    %v37 = vrot.slane %v36, 4
    %v38 = vadd.f32 %v36, %v37
    %v39 = vrot.slane %v38, 2
    %v40 = vadd.f32 %v38, %v39
    %v41 = vrot.slane %v40, 1
    %v42 = vadd.f32 %v40, %v41
    %v43 = vsel %vm35, %v31, 0.0
    %v44 = vrot.slane %v43, 4
    %v45 = vadd.f32 %v43, %v44
    %v46 = vrot.slane %v45, 2
    %v47 = vadd.f32 %v45, %v46
    %v48 = vrot.slane %v47, 1
    %v49 = vadd.f32 %v47, %v48
    %v50 = vsel %vm35, %v28, 0.0
    %v51 = vrot.slane %v50, 4
    %v52 = vadd.f32 %v50, %v51
    %v53 = vrot.slane %v52, 2
    %v54 = vadd.f32 %v52, %v53
    %v55 = vrot.slane %v54, 1
    %v56 = vadd.f32 %v54, %v55
    %v57 = vsel %vm35, %v32, 0.0
    %v58 = vrot.slane %v57, 4
    %v59 = vadd.f32 %v57, %v58
    %v60 = vrot.slane %v59, 2
    %v61 = vadd.f32 %v59, %v60
    %v62 = vrot.slane %v61, 1
    %v63 = vadd.f32 %v61, %v62
    %v68 = vcombine.low %v42, %v49
    %v69 = vcombine.low %v56, %v63
    %v72 = vrcp.pop %v68
    %v73 = vmul.f32 %v26, %v72
    %v74 = vrcp.pop %v69
    %v75 = vmul.f32 %v28, %v74
    %76 = vst [vmem:[#allocation5] sm:$0xff] %v73
    %77 = vst [vmem:[#allocation5 + $0x8] sm:$0xff] %v75
    // Predicated region
    $region10: #{tpu_custom_call.1} parent=1 // pred_check
      _
    $region11: #{tpu_custom_call.1} parent=1 // pred_check_branch
      %79 = sbr.rel (0) target = $region13
    $region12: #{tpu_custom_call.1} parent=1 // pred_region
      %s81 = ssub.s32 256, 256
      %82 = vsyncadd [#allocation4], %s81
      %s83 = sshll.u32 [#allocation5], 4
      %s84 = int_to_ptr.vmem [resolvable:$true] %s83
      %89 = dma.vmem_to_hbm [thread:$0]  %s84, 256, %s1, [#allocation4], 128, 128, 8
    $region13: #{tpu_custom_call.1} parent=1 // pred_fallthru
      _
    // Predicated region
    $region14: #{tpu_custom_call.1} parent=1 // pred_check
      _
    $region15: #{tpu_custom_call.1} parent=1 // pred_check_branch
      %91 = sbr.rel (0) target = $region17
    $region16: #{tpu_custom_call.1} parent=1 // pred_region
      %92 = dma.done [#allocation4], 256
    $region17: #{tpu_custom_call.1} parent=1 // pred_fallthru
      _
    %93 = vsyncpa [#allocation3], 1
    %94 = vsyncpa [#allocation4], 1

</llo_original>
